<compile_context>
chip_gen: v5e
topology: v5e:2x2
jax: 0.10.0
libtpu: 0.0.40
codegen_flags: <defaults>
</compile_context>

<pallas_src>
import functools

import jax
import jax.numpy as jnp
from jax.experimental import pallas as pl
from jax.experimental.pallas import tpu as pltpu

LANE = 128


def _round_up(v, m):
    return (v + m - 1) // m * m


# ---------------------------------------------------------------------------
# Path A: fully fused kernel (small N) — conv1 -> relu -> conv2 -> relu -> conv3
#   (dropout with training=False is the identity -> omitted)
# ---------------------------------------------------------------------------
def _fused_gcn_kernel(a_ref, x_ref, w1_ref, b1_ref, w2_ref, b2_ref,
                      w3_ref, b3_ref, o_ref):
    a = a_ref[...]                                   # [N, N]       bf16
    x = x_ref[...]                                   # [N, 128p]    bf16

    # ---- layer 1: relu((A @ X) @ W1 + b1) --------------------------------
    # Aggregate-first keeps the fp32 intermediate at [N,128] instead of
    # [N,256] (VMEM/layout win).  On v6e/v7x (256-wide MXU) the ordering is
    # MXU-pass-neutral; on v5e (128-wide MXU) it is also a ~2x reduction in
    # MXU passes for this layer.
    ax = jnp.dot(a, x, preferred_element_type=jnp.float32)            # [N, 128p]
    h1 = jnp.dot(ax.astype(jnp.bfloat16), w1_ref[...],
                 preferred_element_type=jnp.float32)                  # [N, 256]
    h1 = jnp.maximum(h1 + b1_ref[...], 0.0)

    # ---- layer 2: relu(A @ (H1 @ W2) + b2)  (F_in 256 > F_out: X@W first) -
    hw2 = jnp.dot(h1.astype(jnp.bfloat16), w2_ref[...],
                  preferred_element_type=jnp.float32)                 # [N, 128p]
    h2 = jnp.dot(a, hw2.astype(jnp.bfloat16),
                 preferred_element_type=jnp.float32)
    h2 = jnp.maximum(h2 + b2_ref[...], 0.0)

    # ---- layer 3: A @ (H2 @ W3) + b3  (logits, no relu) -------------------
    hw3 = jnp.dot(h2.astype(jnp.bfloat16), w3_ref[...],
                  preferred_element_type=jnp.float32)                 # [N, 128p]
    out = jnp.dot(a, hw3.astype(jnp.bfloat16),
                  preferred_element_type=jnp.float32)
    out = out + b3_ref[...]
    o_ref[...] = out.astype(o_ref.dtype)             # lane-dense [N,128p] store


def _gcn_forward_fused(p, x_p, a_bf):
    n = a_bf.shape[0]
    f_in_p, hid1 = p["w1"].shape
    hid2_p = p["w2"].shape[1]
    ncls_p = p["w3"].shape[1]

    flops = 2 * (n * n * f_in_p + n * f_in_p * hid1 +
                 n * hid1 * hid2_p + n * n * hid2_p +
                 n * hid2_p * ncls_p + n * n * ncls_p)
    bytes_accessed = (2 * n * n + 2 * n * f_in_p +
                      2 * (f_in_p * hid1 + hid1 * hid2_p + hid2_p * ncls_p) +
                      4 * (hid1 + hid2_p + ncls_p) + 4 * n * ncls_p)

    return pl.pallas_call(
        _fused_gcn_kernel,
        out_shape=jax.ShapeDtypeStruct((n, ncls_p), jnp.float32),
        in_specs=[
            pl.BlockSpec((n, n), lambda: (0, 0)),             # A_hat
            pl.BlockSpec((n, f_in_p), lambda: (0, 0)),        # X (lane-padded)
            pl.BlockSpec((f_in_p, hid1), lambda: (0, 0)),     # W1 (padded rows)
            pl.BlockSpec((1, hid1), lambda: (0, 0)),          # b1
            pl.BlockSpec((hid1, hid2_p), lambda: (0, 0)),     # W2 (padded cols)
            pl.BlockSpec((1, hid2_p), lambda: (0, 0)),        # b2 (padded)
            pl.BlockSpec((hid2_p, ncls_p), lambda: (0, 0)),   # W3 (padded)
            pl.BlockSpec((1, ncls_p), lambda: (0, 0)),        # b3 (padded)
        ],
        out_specs=pl.BlockSpec((n, ncls_p), lambda: (0, 0)),
        cost_estimate=pl.CostEstimate(flops=flops, transcendentals=0,
                                      bytes_accessed=bytes_accessed),
    )(a_bf, x_p, p["w1"], p["b1"], p["w2"], p["b2"], p["w3"], p["b3"])


# ---------------------------------------------------------------------------
# Path B: tiled per-layer kernel (row-parallel grid + reduction axis)
#   out = act((A @ H) @ W + b), A tiled (block_m, block_k):
#     grid = (rows "parallel", k-reduction "arbitrary"),
#     fp32 accumulator in VMEM scratch, W/b resident via constant index_maps.
# ---------------------------------------------------------------------------
def _gcn_layer_kernel(a_ref, h_ref, w_ref, b_ref, o_ref, acc_ref, *, relu):
    @pl.when(pl.program_id(1) == 0)
    def _():
        acc_ref[...] = jnp.zeros_like(acc_ref)

    acc_ref[...] += jnp.dot(a_ref[...], h_ref[...],
                            preferred_element_type=jnp.float32)

    @pl.when(pl.program_id(1) == pl.num_programs(1) - 1)
    def _():
        out = jnp.dot(acc_ref[...].astype(jnp.bfloat16), w_ref[...],
                      preferred_element_type=jnp.float32) + b_ref[...]
        if relu:
            out = jnp.maximum(out, 0.0)
        o_ref[...] = out.astype(o_ref.dtype)


def _gcn_layer(a_bf, h, w, b, *, relu, block, out_dtype):
    n_pad = a_bf.shape[0]
    f_in = h.shape[1]
    f_out = w.shape[1]
    grid = (n_pad // block, n_pad // block)

    flops = 2 * n_pad * n_pad * f_in + 2 * n_pad * f_in * f_out
    bytes_accessed = (2 * n_pad * n_pad + 2 * n_pad * f_in +
                      2 * f_in * f_out + 4 * f_out +
                      jnp.dtype(out_dtype).itemsize * n_pad * f_out)

    return pl.pallas_call(
        functools.partial(_gcn_layer_kernel, relu=relu),
        out_shape=jax.ShapeDtypeStruct((n_pad, f_out), out_dtype),
        grid_spec=pltpu.PrefetchScalarGridSpec(
            num_scalar_prefetch=0,
            grid=grid,
            in_specs=[
                pl.BlockSpec((block, block), lambda i, k: (i, k)),   # A tile
                pl.BlockSpec((block, f_in), lambda i, k: (k, 0)),    # H tile
                pl.BlockSpec((f_in, f_out), lambda i, k: (0, 0)),    # W resident
                pl.BlockSpec((1, f_out), lambda i, k: (0, 0)),       # b resident
            ],
            out_specs=pl.BlockSpec((block, f_out), lambda i, k: (i, 0)),
            scratch_shapes=[pltpu.VMEM((block, f_in), jnp.float32)],
        ),
        compiler_params=pltpu.CompilerParams(
            dimension_semantics=("parallel", "arbitrary")),
        cost_estimate=pl.CostEstimate(flops=flops, transcendentals=0,
                                      bytes_accessed=int(bytes_accessed)),
    )(a_bf, h, w, b)


def _gcn_forward_tiled(p, x_p, a_bf, *, block):
    n = a_bf.shape[0]
    n_pad = _round_up(n, block)
    if n_pad != n:
        # Zero-padded rows/cols of A contribute nothing to real rows; padded
        # output rows are sliced away by the caller.
        a_bf = jnp.zeros((n_pad, n_pad), jnp.bfloat16).at[:n, :n].set(a_bf)
        x_p = jnp.zeros((n_pad, x_p.shape[1]), jnp.bfloat16).at[:n].set(x_p)
    h1 = _gcn_layer(a_bf, x_p, p["w1"], p["b1"], relu=True,
                    block=block, out_dtype=jnp.bfloat16)
    h2 = _gcn_layer(a_bf, h1, p["w2"], p["b2"], relu=True,
                    block=block, out_dtype=jnp.bfloat16)
    return _gcn_layer(a_bf, h2, p["w3"], p["b3"], relu=False,
                      block=block, out_dtype=jnp.float32)


# ---------------------------------------------------------------------------
# One-time parameter preparation (hoisted out of the forward path):
# pad narrow dims to 128 lanes, cast matmul operands to bf16.
# ---------------------------------------------------------------------------
def prepare_gcn_params(params):
    f_in, hid1 = params["w1"].shape
    hid2 = params["w2"].shape[1]
    ncls = params["w3"].shape[1]
    f_in_p = _round_up(f_in, LANE)
    hid2_p = _round_up(hid2, LANE)
    ncls_p = _round_up(ncls, LANE)

    w1 = jnp.zeros((f_in_p, hid1), jnp.bfloat16).at[:f_in, :].set(
        params["w1"].astype(jnp.bfloat16))
    b1 = params["b1"].reshape(1, hid1).astype(jnp.float32)
    w2 = jnp.zeros((hid1, hid2_p), jnp.bfloat16).at[:, :hid2].set(
        params["w2"].astype(jnp.bfloat16))
    b2 = jnp.zeros((1, hid2_p), jnp.float32).at[:, :hid2].set(
        params["b2"].reshape(1, hid2).astype(jnp.float32))
    w3 = jnp.zeros((hid2_p, ncls_p), jnp.bfloat16).at[:hid2, :ncls].set(
        params["w3"].astype(jnp.bfloat16))
    b3 = jnp.zeros((1, ncls_p), jnp.float32).at[:, :ncls].set(
        params["b3"].reshape(1, ncls).astype(jnp.float32))
    return {"w1": w1, "b1": b1, "w2": w2, "b2": b2, "w3": w3, "b3": b3,
            "num_features": f_in, "num_classes": ncls}


# ---------------------------------------------------------------------------
# Forward: pad per-call inputs, choose fused vs. tiled path, slice output.
# ---------------------------------------------------------------------------
def gcn_forward(prepared, x, a_hat, *, fused_max_n=512, block=512):
    n = x.shape[0]
    f_in = prepared["num_features"]
    ncls = prepared["num_classes"]
    f_in_p = prepared["w1"].shape[0]

    x_p = jnp.zeros((n, f_in_p), jnp.bfloat16).at[:, :f_in].set(
        x.astype(jnp.bfloat16))
    a_bf = a_hat.astype(jnp.bfloat16)

    if n <= fused_max_n:
        out_p = _gcn_forward_fused(prepared, x_p, a_bf)
    else:
        out_p = _gcn_forward_tiled(prepared, x_p, a_bf, block=block)
    return out_p[:n, :ncls]


# ---------------------------------------------------------------------------
# Glue: dense normalized adjacency  D^-1/2 (A + I) D^-1/2  (GCNConv norm).
# A[i, j] = 1 for an edge j -> i (message-passing / in-edge orientation);
# diagonal clamped to 1 so pre-existing self-loops are not double counted.
# (Duplicate edges collapse to weight 1 — consistent with the in-file
# reference; differs from PyG on multigraph edge_index.)
# ---------------------------------------------------------------------------
def build_normalized_adjacency(edge_index, num_nodes):
    src, dst = edge_index[0], edge_index[1]
    a = jnp.zeros((num_nodes, num_nodes), dtype=jnp.float32)
    a = a.at[dst, src].set(1.0)
    a = jnp.maximum(a, jnp.eye(num_nodes, dtype=jnp.float32))  # add self loops
    deg = jnp.sum(a, axis=1)
    d_inv_sqrt = jnp.where(deg > 0, 1.0 / jnp.sqrt(deg), 0.0)
    return d_inv_sqrt[:, None] * a * d_inv_sqrt[None, :]


# ---------------------------------------------------------------------------
# Parameter init (glorot like torch_geometric GCNConv default)
# ---------------------------------------------------------------------------
def glorot(key, shape):
    fan_in, fan_out = shape
    limit = jnp.sqrt(6.0 / (fan_in + fan_out))
    return jax.random.uniform(key, shape, jnp.float32, -limit, limit)


def init_gcn_params(key, num_features, num_classes, hidden1=256, hidden2=32):
    k1, k2, k3 = jax.random.split(key, 3)
    return {
        "w1": glorot(k1, (num_features, hidden1)),
        "b1": jnp.zeros((hidden1,), jnp.float32),
        "w2": glorot(k2, (hidden1, hidden2)),
        "b2": jnp.zeros((hidden2,), jnp.float32),
        "w3": glorot(k3, (hidden2, num_classes)),
        "b3": jnp.zeros((num_classes,), jnp.float32),
    }


# ---------------------------------------------------------------------------
# Pure-JAX fp32 reference
# ---------------------------------------------------------------------------
def gcn_forward_ref(params, x, a_hat):
    h = jnp.maximum(a_hat @ (x @ params["w1"]) + params["b1"], 0.0)
    h = jnp.maximum(a_hat @ (h @ params["w2"]) + params["b2"], 0.0)
    return a_hat @ (h @ params["w3"]) + params["b3"]


if __name__ == "__main__":
    key = jax.random.PRNGKey(0)
    k_x, k_e, k_p = jax.random.split(key, 3)

    # Small synthetic graph: 128 nodes, 32 features, 8 classes.
    num_nodes = 128
    num_features = 32
    num_classes = 8
    num_edges = 512

    # Dense node features (stand-in for attr_matrix.todense()).
    x = jax.random.uniform(k_x, (num_nodes, num_features), jnp.float32)

    # Random edge_index [2, E] (deterministic).
    edge_index = jax.random.randint(k_e, (2, num_edges), 0, num_nodes)

    a_hat = build_normalized_adjacency(edge_index, num_nodes)
    params = init_gcn_params(k_p, num_features, num_classes)
    prepared = prepare_gcn_params(params)       # one-time padding/casting

    ref = gcn_forward_ref(params, x, a_hat)

    # Path A: fused single-call kernel (default for N <= 512).
    out_fused = jax.block_until_ready(gcn_forward(prepared, x, a_hat))
    assert out_fused.shape == (num_nodes, num_classes)
    assert jnp.allclose(out_fused, ref, atol=5e-2, rtol=5e-2), (
        "fused path mismatch; max abs diff = %f"
        % float(jnp.max(jnp.abs(out_fused - ref))))

    # Path B: tiled per-layer kernels (forced here with small tiles to
    # exercise the row-parallel + reduction-accumulator path).
    out_tiled = jax.block_until_ready(
        gcn_forward(prepared, x, a_hat, fused_max_n=0, block=128))
    assert out_tiled.shape == (num_nodes, num_classes)
    assert jnp.allclose(out_tiled, ref, atol=5e-2, rtol=5e-2), (
        "tiled path mismatch; max abs diff = %f"
        % float(jnp.max(jnp.abs(out_tiled - ref))))

    print("KERNEL_OK")
</pallas_src>

<mosaic_0001>
module attributes {stable_mosaic.version = 11 : i64} {
  func.func @_fused_gcn_kernel(%arg0: memref<128x128xbf16, #tpu.memory_space<vmem>>, %arg1: memref<128x128xbf16, #tpu.memory_space<vmem>>, %arg2: memref<128x256xbf16, #tpu.memory_space<vmem>>, %arg3: memref<1x256xf32, #tpu.memory_space<vmem>>, %arg4: memref<256x128xbf16, #tpu.memory_space<vmem>>, %arg5: memref<1x128xf32, #tpu.memory_space<vmem>>, %arg6: memref<128x128xbf16, #tpu.memory_space<vmem>>, %arg7: memref<1x128xf32, #tpu.memory_space<vmem>>, %arg8: memref<128x128xf32, #tpu.memory_space<vmem>>) attributes {dimension_semantics = [], scalar_prefetch = 0 : i64, scratch_operands = 0 : i64, tpu.core_type = #tpu.core_type<tc>} {
    %c0 = arith.constant 0 : index
    %c0_0 = arith.constant 0 : index
    %0 = vector.load %arg0[%c0, %c0_0] : memref<128x128xbf16, #tpu.memory_space<vmem>>, vector<128x128xbf16>
    %c0_1 = arith.constant 0 : index
    %c0_2 = arith.constant 0 : index
    %1 = vector.load %arg1[%c0_1, %c0_2] : memref<128x128xbf16, #tpu.memory_space<vmem>>, vector<128x128xbf16>
    %cst = arith.constant dense<0.000000e+00> : vector<128x128xf32>
    %2 = tpu.matmul %0, %1, %cst {dimension_numbers = #tpu.dot_dimension_numbers<[1], [0], [0], [1], [0, 0, 1, 1], [], []>} : vector<128x128xbf16>, vector<128x128xbf16>, vector<128x128xf32> -> vector<128x128xf32>
    %3 = arith.truncf %2 : vector<128x128xf32> to vector<128x128xbf16>
    %c0_3 = arith.constant 0 : index
    %c0_4 = arith.constant 0 : index
    %4 = vector.load %arg2[%c0_3, %c0_4] : memref<128x256xbf16, #tpu.memory_space<vmem>>, vector<128x256xbf16>
    %cst_5 = arith.constant dense<0.000000e+00> : vector<128x256xf32>
    %5 = tpu.matmul %3, %4, %cst_5 {dimension_numbers = #tpu.dot_dimension_numbers<[1], [0], [0], [1], [0, 0, 1, 1], [], []>} : vector<128x128xbf16>, vector<128x256xbf16>, vector<128x256xf32> -> vector<128x256xf32>
    %c0_6 = arith.constant 0 : index
    %c0_7 = arith.constant 0 : index
    %6 = vector.load %arg3[%c0_6, %c0_7] : memref<1x256xf32, #tpu.memory_space<vmem>>, vector<1x256xf32>
    %7 = vector.broadcast %6 : vector<1x256xf32> to vector<128x256xf32>
    %8 = arith.addf %5, %7 : vector<128x256xf32>
    %cst_8 = arith.constant 0.000000e+00 : f32
    %9 = vector.broadcast %cst_8 : f32 to vector<128x256xf32>
    %10 = arith.maximumf %8, %9 : vector<128x256xf32>
    %11 = arith.truncf %10 : vector<128x256xf32> to vector<128x256xbf16>
    %c0_9 = arith.constant 0 : index
    %c0_10 = arith.constant 0 : index
    %12 = vector.load %arg4[%c0_9, %c0_10] : memref<256x128xbf16, #tpu.memory_space<vmem>>, vector<256x128xbf16>
    %cst_11 = arith.constant dense<0.000000e+00> : vector<128x128xf32>
    %13 = tpu.matmul %11, %12, %cst_11 {dimension_numbers = #tpu.dot_dimension_numbers<[1], [0], [0], [1], [0, 0, 1, 1], [], []>} : vector<128x256xbf16>, vector<256x128xbf16>, vector<128x128xf32> -> vector<128x128xf32>
    %14 = arith.truncf %13 : vector<128x128xf32> to vector<128x128xbf16>
    %cst_12 = arith.constant dense<0.000000e+00> : vector<128x128xf32>
    %15 = tpu.matmul %0, %14, %cst_12 {dimension_numbers = #tpu.dot_dimension_numbers<[1], [0], [0], [1], [0, 0, 1, 1], [], []>} : vector<128x128xbf16>, vector<128x128xbf16>, vector<128x128xf32> -> vector<128x128xf32>
    %c0_13 = arith.constant 0 : index
    %c0_14 = arith.constant 0 : index
    %16 = vector.load %arg5[%c0_13, %c0_14] : memref<1x128xf32, #tpu.memory_space<vmem>>, vector<1x128xf32>
    %17 = vector.broadcast %16 : vector<1x128xf32> to vector<128x128xf32>
    %18 = arith.addf %15, %17 : vector<128x128xf32>
    %cst_15 = arith.constant 0.000000e+00 : f32
    %19 = vector.broadcast %cst_15 : f32 to vector<128x128xf32>
    %20 = arith.maximumf %18, %19 : vector<128x128xf32>
    %21 = arith.truncf %20 : vector<128x128xf32> to vector<128x128xbf16>
    %c0_16 = arith.constant 0 : index
    %c0_17 = arith.constant 0 : index
    %22 = vector.load %arg6[%c0_16, %c0_17] : memref<128x128xbf16, #tpu.memory_space<vmem>>, vector<128x128xbf16>
    %cst_18 = arith.constant dense<0.000000e+00> : vector<128x128xf32>
    %23 = tpu.matmul %21, %22, %cst_18 {dimension_numbers = #tpu.dot_dimension_numbers<[1], [0], [0], [1], [0, 0, 1, 1], [], []>} : vector<128x128xbf16>, vector<128x128xbf16>, vector<128x128xf32> -> vector<128x128xf32>
    %24 = arith.truncf %23 : vector<128x128xf32> to vector<128x128xbf16>
    %cst_19 = arith.constant dense<0.000000e+00> : vector<128x128xf32>
    %25 = tpu.matmul %0, %24, %cst_19 {dimension_numbers = #tpu.dot_dimension_numbers<[1], [0], [0], [1], [0, 0, 1, 1], [], []>} : vector<128x128xbf16>, vector<128x128xbf16>, vector<128x128xf32> -> vector<128x128xf32>
    %c0_20 = arith.constant 0 : index
    %c0_21 = arith.constant 0 : index
    %26 = vector.load %arg7[%c0_20, %c0_21] : memref<1x128xf32, #tpu.memory_space<vmem>>, vector<1x128xf32>
    %27 = vector.broadcast %26 : vector<1x128xf32> to vector<128x128xf32>
    %28 = arith.addf %25, %27 : vector<128x128xf32>
    %c0_22 = arith.constant 0 : index
    %c0_23 = arith.constant 0 : index
    %29 = vector.load %arg8[%c0_22, %c0_23] : memref<128x128xf32, #tpu.memory_space<vmem>>, vector<128x128xf32>
    tpu.vector_store %arg8[%c0_22, %c0_23], %28 {strides = array<i32>} : memref<128x128xf32, #tpu.memory_space<vmem>>, vector<128x128xf32>,
    return
  }
}

</mosaic_0001>

<llo_original>
// kernel: tpu_custom_call.1
$region0: #{tpu_custom_call.1}
  #allocation0 [shape = 'u32[]', space=smem, size = 0x4, offset = 0x4, fixed_abs, tag = 'smem constant byte address 0x4 - core index']
  #allocation1 [shape = 'u32[72,128]{1,0:T(1,128)}', space=vmem, size = 0x9000, scoped, tag = 'internal scratch']
  %s0 = inlined_call_operand.hbm [shape: bf16[128,128], index: 0, kind: input, shape index: {}]
  %s1 = inlined_call_operand.hbm [shape: bf16[128,128], index: 1, kind: input, shape index: {}]
  %s2 = inlined_call_operand.hbm [shape: bf16[128,256], index: 2, kind: input, shape index: {}]
  %s3 = inlined_call_operand.vmem [shape: f32[1,256], index: 3, kind: input, shape index: {}]
  %s4 = inlined_call_operand.hbm [shape: bf16[256,128], index: 4, kind: input, shape index: {}]
  %s5 = inlined_call_operand.vmem [shape: f32[1,128], index: 5, kind: input, shape index: {}]
  %s6 = inlined_call_operand.hbm [shape: bf16[128,128], index: 6, kind: input, shape index: {}]
  %s7 = inlined_call_operand.vmem [shape: f32[1,128], index: 7, kind: input, shape index: {}]
  %s8 = inlined_call_operand.hbm [shape: f32[128,128], index: 8, kind: output, shape index: {}]
  %s9 = sld [smem:[#allocation0]]
  $region62: #{tpu_custom_call.1} parent=0
    _
  %s11 = ssub.s32 1, %s9
  %s12 = scalar_select 0, %s11, %s9
  $region1: #{tpu_custom_call.1} parent=0
    #allocation2 [shape = 'u8[32768]{0}', space=vmem, size = 0x8000, scoped, tag = 'input window, operand 0, single buffered']
    #allocation3 [shape = 's32[1]{0}', space=sflag, size = 0x4, scoped, tag = 'scoped memory for tpu_custom_call.1']
    #allocation4 [shape = 's32[1]{0}', space=sflag, size = 0x4, scoped, tag = 'scoped memory for tpu_custom_call.1']
    #allocation5 [shape = 'u8[32768]{0}', space=vmem, size = 0x8000, scoped, tag = 'input window, operand 1, single buffered']
    #allocation6 [shape = 's32[1]{0}', space=sflag, size = 0x4, scoped, tag = 'scoped memory for tpu_custom_call.1']
    #allocation7 [shape = 'u8[65536]{0}', space=vmem, size = 0x10000, scoped, tag = 'input window, operand 2, single buffered']
    #allocation8 [shape = 'u8[65536]{0}', space=vmem, size = 0x10000, scoped, tag = 'input window, operand 4, single buffered']
    #allocation9 [shape = 's32[1]{0}', space=sflag, size = 0x4, scoped, tag = 'scoped memory for tpu_custom_call.1']
    #allocation10 [shape = 'u8[32768]{0}', space=vmem, size = 0x8000, scoped, tag = 'input window, operand 6, single buffered']
    #allocation11 [shape = 'u8[65536]{0}', space=vmem, size = 0x10000, scoped, tag = 'output window, operand 0, single buffered']
    %13 = vsyncpa [#allocation3], 0
    %14 = vsyncpa [#allocation6], 0
    %15 = vsyncpa [#allocation9], 0
    %16 = vsyncpa [#allocation4], 0
    // Predicated region
    $region2: #{tpu_custom_call.1} parent=1 // pred_check
      _
    $region3: #{tpu_custom_call.1} parent=1 // pred_check_branch
      %18 = sbr.rel (0) target = $region5
    $region4: #{tpu_custom_call.1} parent=1 // pred_region
      %20 = vsyncadd [#allocation3], 0
      %s21 = sshll.u32 %s0, 4
      %s22 = int_to_ptr.hbm [resolvable:$true] %s21
      %s23 = sshll.u32 [#allocation2], 4
      %s24 = int_to_ptr.vmem [resolvable:$true] %s23
      %29 = dma.hbm_to_vmem [thread:$0]  %s22, 1024, %s24, [#allocation3], 64, 64, 4
    $region5: #{tpu_custom_call.1} parent=1 // pred_fallthru
      _
    // Predicated region
    $region6: #{tpu_custom_call.1} parent=1 // pred_check
      _
    $region7: #{tpu_custom_call.1} parent=1 // pred_check_branch
      %31 = sbr.rel (0) target = $region9
    $region8: #{tpu_custom_call.1} parent=1 // pred_region
      %33 = vsyncadd [#allocation6], 0
      %s34 = sshll.u32 %s1, 4
      %s35 = int_to_ptr.hbm [resolvable:$true] %s34
      %s36 = sshll.u32 [#allocation5], 4
      %s37 = int_to_ptr.vmem [resolvable:$true] %s36
      %42 = dma.hbm_to_vmem [thread:$0]  %s35, 1024, %s37, [#allocation6], 64, 64, 4
    $region9: #{tpu_custom_call.1} parent=1 // pred_fallthru
      _
    // Predicated region
    $region10: #{tpu_custom_call.1} parent=1 // pred_check
      _
    $region11: #{tpu_custom_call.1} parent=1 // pred_check_branch
      %44 = sbr.rel (0) target = $region13
    $region12: #{tpu_custom_call.1} parent=1 // pred_region
      %46 = vsyncadd [#allocation6], 0
      %s47 = sshll.u32 %s2, 4
      %s48 = int_to_ptr.hbm [resolvable:$true] %s47
      %s49 = sshll.u32 [#allocation7], 4
      %s50 = int_to_ptr.vmem [resolvable:$true] %s49
      %55 = dma.hbm_to_vmem [thread:$0]  %s48, 2048, %s50, [#allocation6], 128, 128, 8
    $region13: #{tpu_custom_call.1} parent=1 // pred_fallthru
      _
    // Predicated region
    $region14: #{tpu_custom_call.1} parent=1 // pred_check
      _
    $region15: #{tpu_custom_call.1} parent=1 // pred_check_branch
      %57 = sbr.rel (0) target = $region17
    $region16: #{tpu_custom_call.1} parent=1 // pred_region
      _
    $region17: #{tpu_custom_call.1} parent=1 // pred_fallthru
      _
    // Predicated region
    $region18: #{tpu_custom_call.1} parent=1 // pred_check
      _
    $region19: #{tpu_custom_call.1} parent=1 // pred_check_branch
      %59 = sbr.rel (0) target = $region21
    $region20: #{tpu_custom_call.1} parent=1 // pred_region
      %61 = vsyncadd [#allocation9], 0
      %s62 = sshll.u32 %s4, 4
      %s63 = int_to_ptr.hbm [resolvable:$true] %s62
      %s64 = sshll.u32 [#allocation8], 4
      %s65 = int_to_ptr.vmem [resolvable:$true] %s64
      %70 = dma.hbm_to_vmem [thread:$0]  %s63, 2048, %s65, [#allocation9], 64, 64, 4
    $region21: #{tpu_custom_call.1} parent=1 // pred_fallthru
      _
    // Predicated region
    $region22: #{tpu_custom_call.1} parent=1 // pred_check
      _
    $region23: #{tpu_custom_call.1} parent=1 // pred_check_branch
      %72 = sbr.rel (0) target = $region25
    $region24: #{tpu_custom_call.1} parent=1 // pred_region
      _
    $region25: #{tpu_custom_call.1} parent=1 // pred_fallthru
      _
    // Predicated region
    $region26: #{tpu_custom_call.1} parent=1 // pred_check
      _
    $region27: #{tpu_custom_call.1} parent=1 // pred_check_branch
      %74 = sbr.rel (0) target = $region29
    $region28: #{tpu_custom_call.1} parent=1 // pred_region
      %76 = vsyncadd [#allocation9], 0
      %s77 = sshll.u32 %s6, 4
      %s78 = int_to_ptr.hbm [resolvable:$true] %s77
      %s79 = sshll.u32 [#allocation10], 4
      %s80 = int_to_ptr.vmem [resolvable:$true] %s79
      %85 = dma.hbm_to_vmem [thread:$0]  %s78, 1024, %s80, [#allocation9], 64, 64, 4
    $region29: #{tpu_custom_call.1} parent=1 // pred_fallthru
      _
    // Predicated region
    $region30: #{tpu_custom_call.1} parent=1 // pred_check
      _
    $region31: #{tpu_custom_call.1} parent=1 // pred_check_branch
      %87 = sbr.rel (0) target = $region33
    $region32: #{tpu_custom_call.1} parent=1 // pred_region
      _
    $region33: #{tpu_custom_call.1} parent=1 // pred_fallthru
      _
    // Predicated region
    $region34: #{tpu_custom_call.1} parent=1 // pred_check
      _
    $region35: #{tpu_custom_call.1} parent=1 // pred_check_branch
      %89 = sbr.rel (0) target = $region37
    $region36: #{tpu_custom_call.1} parent=1 // pred_region
      %91 = dma.done [#allocation3], 1024
    $region37: #{tpu_custom_call.1} parent=1 // pred_fallthru
      _
    // Predicated region
    $region38: #{tpu_custom_call.1} parent=1 // pred_check
      _
    $region39: #{tpu_custom_call.1} parent=1 // pred_check_branch
      %93 = sbr.rel (0) target = $region41
    $region40: #{tpu_custom_call.1} parent=1 // pred_region
      %95 = dma.done [#allocation6], 1024
    $region41: #{tpu_custom_call.1} parent=1 // pred_fallthru
      _
    // Predicated region
    $region42: #{tpu_custom_call.1} parent=1 // pred_check
      _
    $region43: #{tpu_custom_call.1} parent=1 // pred_check_branch
      %97 = sbr.rel (0) target = $region45
    $region44: #{tpu_custom_call.1} parent=1 // pred_region
      %99 = dma.done [#allocation6], 2048
    $region45: #{tpu_custom_call.1} parent=1 // pred_fallthru
      _
    // Predicated region
    $region46: #{tpu_custom_call.1} parent=1 // pred_check
      _
    $region47: #{tpu_custom_call.1} parent=1 // pred_check_branch
      %101 = sbr.rel (0) target = $region49
    $region48: #{tpu_custom_call.1} parent=1 // pred_region
      %103 = dma.done [#allocation9], 2048
    $region49: #{tpu_custom_call.1} parent=1 // pred_fallthru
      _
    // Predicated region
    $region50: #{tpu_custom_call.1} parent=1 // pred_check
      _
    $region51: #{tpu_custom_call.1} parent=1 // pred_check_branch
      %105 = sbr.rel (0) target = $region53
    $region52: #{tpu_custom_call.1} parent=1 // pred_region
      %107 = dma.done [#allocation9], 1024
    $region53: #{tpu_custom_call.1} parent=1 // pred_fallthru
      _
    %v108 = vld [vmem:[#allocation2] sm:$0xf]
    %v109 = vld [vmem:[#allocation2 + $0x4] sm:$0xf]
    %v110 = vld [vmem:[#allocation2 + $0x8] sm:$0xf]
    %v111 = vld [vmem:[#allocation2 + $0xc] sm:$0xf]
    %v112 = vld [vmem:[#allocation2 + $0x10] sm:$0xf]
    %v113 = vld [vmem:[#allocation2 + $0x14] sm:$0xf]
    %v114 = vld [vmem:[#allocation2 + $0x18] sm:$0xf]
    %v115 = vld [vmem:[#allocation2 + $0x1c] sm:$0xf]
    %v116 = vld [vmem:[#allocation2 + $0x20] sm:$0xf]
    %v117 = vld [vmem:[#allocation2 + $0x24] sm:$0xf]
    %v118 = vld [vmem:[#allocation2 + $0x28] sm:$0xf]
    %v119 = vld [vmem:[#allocation2 + $0x2c] sm:$0xf]
    %v120 = vld [vmem:[#allocation2 + $0x30] sm:$0xf]
    %v121 = vld [vmem:[#allocation2 + $0x34] sm:$0xf]
    %v122 = vld [vmem:[#allocation2 + $0x38] sm:$0xf]
    %v123 = vld [vmem:[#allocation2 + $0x3c] sm:$0xf]
    %v124 = vld [vmem:[#allocation5] sm:$0xf]
    %v125 = vld [vmem:[#allocation5 + $0x4] sm:$0xf]
    %v126 = vld [vmem:[#allocation5 + $0x8] sm:$0xf]
    %v127 = vld [vmem:[#allocation5 + $0xc] sm:$0xf]
    %v128 = vld [vmem:[#allocation5 + $0x10] sm:$0xf]
    %v129 = vld [vmem:[#allocation5 + $0x14] sm:$0xf]
    %v130 = vld [vmem:[#allocation5 + $0x18] sm:$0xf]
    %v131 = vld [vmem:[#allocation5 + $0x1c] sm:$0xf]
    %v132 = vld [vmem:[#allocation5 + $0x20] sm:$0xf]
    %v133 = vld [vmem:[#allocation5 + $0x24] sm:$0xf]
    %v134 = vld [vmem:[#allocation5 + $0x28] sm:$0xf]
    %v135 = vld [vmem:[#allocation5 + $0x2c] sm:$0xf]
    %v136 = vld [vmem:[#allocation5 + $0x30] sm:$0xf]
    %v137 = vld [vmem:[#allocation5 + $0x34] sm:$0xf]
    %v138 = vld [vmem:[#allocation5 + $0x38] sm:$0xf]
    %v139 = vld [vmem:[#allocation5 + $0x3c] sm:$0xf]
    %v156 = vunpack.c.l.b16 %v108
    %v157 = vunpack.c.l.b16 %v109
    %v158 = vunpack.c.l.b16 %v110
    %v159 = vunpack.c.l.b16 %v111
    %v160 = vunpack.c.l.b16 %v112
    %v161 = vunpack.c.l.b16 %v113
    %v162 = vunpack.c.l.b16 %v114
    %v163 = vunpack.c.l.b16 %v115
    %v164 = vunpack.c.l.b16 %v116
    %v165 = vunpack.c.l.b16 %v117
    %v166 = vunpack.c.l.b16 %v118
    %v167 = vunpack.c.l.b16 %v119
    %v168 = vunpack.c.l.b16 %v120
    %v169 = vunpack.c.l.b16 %v121
    %v170 = vunpack.c.l.b16 %v122
    %v171 = vunpack.c.l.b16 %v123
    %v172 = vpack.c.b16 %v157, %v156
    %v173 = vpack.c.b16 %v159, %v158
    %v174 = vpack.c.b16 %v161, %v160
    %v175 = vpack.c.b16 %v163, %v162
    %v176 = vpack.c.b16 %v165, %v164
    %v177 = vpack.c.b16 %v167, %v166
    %v178 = vpack.c.b16 %v169, %v168
    %v179 = vpack.c.b16 %v171, %v170
    %v204 = vunpack.c.l.b16 %v124
    %v205 = vunpack.c.l.b16 %v125
    %v206 = vunpack.c.l.b16 %v126
    %v207 = vunpack.c.l.b16 %v127
    %v208 = vunpack.c.l.b16 %v128
    %v209 = vunpack.c.l.b16 %v129
    %v210 = vunpack.c.l.b16 %v130
    %v211 = vunpack.c.l.b16 %v131
    %v212 = vunpack.c.l.b16 %v132
    %v213 = vunpack.c.l.b16 %v133
    %v214 = vunpack.c.l.b16 %v134
    %v215 = vunpack.c.l.b16 %v135
    %v216 = vunpack.c.l.b16 %v136
    %v217 = vunpack.c.l.b16 %v137
    %v218 = vunpack.c.l.b16 %v138
    %v219 = vunpack.c.l.b16 %v139
    %v220 = vpack.c.b16 %v205, %v204
    %v221 = vpack.c.b16 %v207, %v206
    %v222 = vpack.c.b16 %v209, %v208
    %v223 = vpack.c.b16 %v211, %v210
    %v224 = vpack.c.b16 %v213, %v212
    %v225 = vpack.c.b16 %v215, %v214
    %v226 = vpack.c.b16 %v217, %v216
    %v227 = vpack.c.b16 %v219, %v218
    %236 = vmatpush.bf16.msra.mxu0 %v227
    %237 = vmatpush.bf16.msra.mxu0 %v226
    %238 = vmatpush.bf16.msra.mxu0 %v225
    %239 = vmatpush.bf16.msra.mxu0 %v224
    %240 = vmatpush.bf16.msra.mxu0 %v223
    %241 = vmatpush.bf16.msra.mxu0 %v222
    %242 = vmatpush.bf16.msra.mxu0 %v221
    %243 = vmatpush.bf16.msra.mxu0 %v220
    %244 = vmatmul.bf16.gmra.mxu0 %v172
    %v245 = vpop.f32.mrf.mxu0
    %v246 = vadd.f32 0.0, %v245
    %v247 = vpop.f32.mrf.mxu0
    %v248 = vadd.f32 0.0, %v247
    %249 = vmatmul.bf16.gmra.mxu0 %v173
    %v250 = vpop.f32.mrf.mxu0
    %v251 = vadd.f32 0.0, %v250
    %v252 = vpop.f32.mrf.mxu0
    %v253 = vadd.f32 0.0, %v252
    %254 = vmatmul.bf16.gmra.mxu0 %v174
    %v255 = vpop.f32.mrf.mxu0
    %v256 = vadd.f32 0.0, %v255
    %v257 = vpop.f32.mrf.mxu0
    %v258 = vadd.f32 0.0, %v257
    %259 = vmatmul.bf16.gmra.mxu0 %v175
    %v260 = vpop.f32.mrf.mxu0
    %v261 = vadd.f32 0.0, %v260
    %v262 = vpop.f32.mrf.mxu0
    %v263 = vadd.f32 0.0, %v262
    %264 = vmatmul.bf16.gmra.mxu0 %v176
    %v265 = vpop.f32.mrf.mxu0
    %v266 = vadd.f32 0.0, %v265
    %v267 = vpop.f32.mrf.mxu0
    %v268 = vadd.f32 0.0, %v267
    %269 = vmatmul.bf16.gmra.mxu0 %v177
    %v270 = vpop.f32.mrf.mxu0
    %v271 = vadd.f32 0.0, %v270
    %v272 = vpop.f32.mrf.mxu0
    %v273 = vadd.f32 0.0, %v272
    %274 = vmatmul.bf16.gmra.mxu0 %v178
    %v275 = vpop.f32.mrf.mxu0
    %v276 = vadd.f32 0.0, %v275
    %v277 = vpop.f32.mrf.mxu0
    %v278 = vadd.f32 0.0, %v277
    %279 = vmatmul.bf16.gmra.mxu0 %v179
    %v280 = vpop.f32.mrf.mxu0
    %v281 = vadd.f32 0.0, %v280
    %v282 = vpop.f32.mrf.mxu0
    %v283 = vadd.f32 0.0, %v282
    %284 = vdwg.mxu0
    %v285 = vpack.c.bf16 %v248, %v246
    %v286 = vpack.c.bf16 %v253, %v251
    %v287 = vpack.c.bf16 %v258, %v256
    %v288 = vpack.c.bf16 %v263, %v261
    %v289 = vpack.c.bf16 %v268, %v266
    %v290 = vpack.c.bf16 %v273, %v271
    %v291 = vpack.c.bf16 %v278, %v276
    %v292 = vpack.c.bf16 %v283, %v281
    %v293 = vld [vmem:[#allocation7] sm:$0xff]
    %v294 = vld [vmem:[#allocation7 + $0x8] sm:$0xff]
    %v295 = vld [vmem:[#allocation7 + $0x10] sm:$0xff]
    %v296 = vld [vmem:[#allocation7 + $0x18] sm:$0xff]
    %v297 = vld [vmem:[#allocation7 + $0x20] sm:$0xff]
    %v298 = vld [vmem:[#allocation7 + $0x28] sm:$0xff]
    %v299 = vld [vmem:[#allocation7 + $0x30] sm:$0xff]
    %v300 = vld [vmem:[#allocation7 + $0x38] sm:$0xff]
    %v301 = vld [vmem:[#allocation7 + $0x40] sm:$0xff]
    %v302 = vld [vmem:[#allocation7 + $0x48] sm:$0xff]
    %v303 = vld [vmem:[#allocation7 + $0x50] sm:$0xff]
    %v304 = vld [vmem:[#allocation7 + $0x58] sm:$0xff]
    %v305 = vld [vmem:[#allocation7 + $0x60] sm:$0xff]
    %v306 = vld [vmem:[#allocation7 + $0x68] sm:$0xff]
    %v307 = vld [vmem:[#allocation7 + $0x70] sm:$0xff]
    %v308 = vld [vmem:[#allocation7 + $0x78] sm:$0xff]
    %v309 = vld [vmem:[%s3] sm:$0x3]
    %v311 = vperm.slane %v309, 0
    %v312 = vperm.slane %v309, 1
    %v331 = vunpack.c.l.b16 %v293
    %v332 = vunpack.c.h.b16 %v293
    %v333 = vunpack.c.l.b16 %v294
    %v334 = vunpack.c.h.b16 %v294
    %v335 = vunpack.c.l.b16 %v295
    %v336 = vunpack.c.h.b16 %v295
    %v337 = vunpack.c.l.b16 %v296
    %v338 = vunpack.c.h.b16 %v296
    %v339 = vunpack.c.l.b16 %v297
    %v340 = vunpack.c.h.b16 %v297
    %v341 = vunpack.c.l.b16 %v298
    %v342 = vunpack.c.h.b16 %v298
    %v343 = vunpack.c.l.b16 %v299
    %v344 = vunpack.c.h.b16 %v299
    %v345 = vunpack.c.l.b16 %v300
    %v346 = vunpack.c.h.b16 %v300
    %v347 = vunpack.c.l.b16 %v301
    %v348 = vunpack.c.h.b16 %v301
    %v349 = vunpack.c.l.b16 %v302
    %v350 = vunpack.c.h.b16 %v302
    %v351 = vunpack.c.l.b16 %v303
    %v352 = vunpack.c.h.b16 %v303
    %v353 = vunpack.c.l.b16 %v304
    %v354 = vunpack.c.h.b16 %v304
    %v355 = vunpack.c.l.b16 %v305
    %v356 = vunpack.c.h.b16 %v305
    %v357 = vunpack.c.l.b16 %v306
    %v358 = vunpack.c.h.b16 %v306
    %v359 = vunpack.c.l.b16 %v307
    %v360 = vunpack.c.h.b16 %v307
    %v361 = vunpack.c.l.b16 %v308
    %v362 = vunpack.c.h.b16 %v308
    %v363 = vpack.c.b16 %v333, %v331
    %v364 = vpack.c.b16 %v334, %v332
    %v365 = vpack.c.b16 %v337, %v335
    %v366 = vpack.c.b16 %v338, %v336
    %v367 = vpack.c.b16 %v341, %v339
    %v368 = vpack.c.b16 %v342, %v340
    %v369 = vpack.c.b16 %v345, %v343
    %v370 = vpack.c.b16 %v346, %v344
    %v371 = vpack.c.b16 %v349, %v347
    %v372 = vpack.c.b16 %v350, %v348
    %v373 = vpack.c.b16 %v353, %v351
    %v374 = vpack.c.b16 %v354, %v352
    %v375 = vpack.c.b16 %v357, %v355
    %v376 = vpack.c.b16 %v358, %v356
    %v377 = vpack.c.b16 %v361, %v359
    %v378 = vpack.c.b16 %v362, %v360
    %395 = vmatpush.bf16.msra.mxu0 %v377
    %396 = vmatpush.bf16.msra.mxu0 %v375
    %397 = vmatpush.bf16.msra.mxu0 %v373
    %398 = vmatpush.bf16.msra.mxu0 %v371
    %399 = vmatpush.bf16.msra.mxu0 %v369
    %400 = vmatpush.bf16.msra.mxu0 %v367
    %401 = vmatpush.bf16.msra.mxu0 %v365
    %402 = vmatpush.bf16.msra.mxu0 %v363
    %403 = vmatmul.bf16.gmra.mxu0 %v285
    %v404 = vpop.f32.mrf.mxu0
    %v405 = vadd.f32 %v311, %v404
    %v406 = vpop.f32.mrf.mxu0
    %v407 = vadd.f32 %v311, %v406
    %408 = vmatmul.bf16.gmra.mxu0 %v286
    %v409 = vpop.f32.mrf.mxu0
    %v410 = vadd.f32 %v311, %v409
    %v411 = vpop.f32.mrf.mxu0
    %v412 = vadd.f32 %v311, %v411
    %413 = vmatmul.bf16.gmra.mxu0 %v287
    %v414 = vpop.f32.mrf.mxu0
    %v415 = vadd.f32 %v311, %v414
    %v416 = vpop.f32.mrf.mxu0
    %v417 = vadd.f32 %v311, %v416
    %418 = vmatmul.bf16.gmra.mxu0 %v288
    %v419 = vpop.f32.mrf.mxu0
    %v420 = vadd.f32 %v311, %v419
    %v421 = vpop.f32.mrf.mxu0
    %v422 = vadd.f32 %v311, %v421
    %423 = vmatmul.bf16.gmra.mxu0 %v289
    %v424 = vpop.f32.mrf.mxu0
    %v425 = vadd.f32 %v311, %v424
    %v426 = vpop.f32.mrf.mxu0
    %v427 = vadd.f32 %v311, %v426
    %428 = vmatmul.bf16.gmra.mxu0 %v290
    %v429 = vpop.f32.mrf.mxu0
    %v430 = vadd.f32 %v311, %v429
    %v431 = vpop.f32.mrf.mxu0
    %v432 = vadd.f32 %v311, %v431
    %433 = vmatmul.bf16.gmra.mxu0 %v291
    %v434 = vpop.f32.mrf.mxu0
    %v435 = vadd.f32 %v311, %v434
    %v436 = vpop.f32.mrf.mxu0
    %v437 = vadd.f32 %v311, %v436
    %438 = vmatmul.bf16.gmra.mxu0 %v292
    %v439 = vpop.f32.mrf.mxu0
    %v440 = vadd.f32 %v311, %v439
    %v441 = vpop.f32.mrf.mxu0
    %v442 = vadd.f32 %v311, %v441
    %443 = vdwg.mxu0
    %444 = vmatpush.bf16.msra.mxu0 %v378
    %445 = vmatpush.bf16.msra.mxu0 %v376
    %446 = vmatpush.bf16.msra.mxu0 %v374
    %447 = vmatpush.bf16.msra.mxu0 %v372
    %448 = vmatpush.bf16.msra.mxu0 %v370
    %449 = vmatpush.bf16.msra.mxu0 %v368
    %450 = vmatpush.bf16.msra.mxu0 %v366
    %451 = vmatpush.bf16.msra.mxu0 %v364
    %452 = vmatmul.bf16.gmra.mxu0 %v285
    %v453 = vpop.f32.mrf.mxu0
    %v454 = vadd.f32 %v312, %v453
    %v455 = vpop.f32.mrf.mxu0
    %v456 = vadd.f32 %v312, %v455
    %457 = vmatmul.bf16.gmra.mxu0 %v286
    %v458 = vpop.f32.mrf.mxu0
    %v459 = vadd.f32 %v312, %v458
    %v460 = vpop.f32.mrf.mxu0
    %v461 = vadd.f32 %v312, %v460
    %462 = vmatmul.bf16.gmra.mxu0 %v287
    %v463 = vpop.f32.mrf.mxu0
    %v464 = vadd.f32 %v312, %v463
    %v465 = vpop.f32.mrf.mxu0
    %v466 = vadd.f32 %v312, %v465
    %467 = vmatmul.bf16.gmra.mxu0 %v288
    %v468 = vpop.f32.mrf.mxu0
    %v469 = vadd.f32 %v312, %v468
    %v470 = vpop.f32.mrf.mxu0
    %v471 = vadd.f32 %v312, %v470
    %472 = vmatmul.bf16.gmra.mxu0 %v289
    %v473 = vpop.f32.mrf.mxu0
    %v474 = vadd.f32 %v312, %v473
    %v475 = vpop.f32.mrf.mxu0
    %v476 = vadd.f32 %v312, %v475
    %477 = vmatmul.bf16.gmra.mxu0 %v290
    %v478 = vpop.f32.mrf.mxu0
    %v479 = vadd.f32 %v312, %v478
    %v480 = vpop.f32.mrf.mxu0
    %v481 = vadd.f32 %v312, %v480
    %482 = vmatmul.bf16.gmra.mxu0 %v291
    %v483 = vpop.f32.mrf.mxu0
    %v484 = vadd.f32 %v312, %v483
    %v485 = vpop.f32.mrf.mxu0
    %v486 = vadd.f32 %v312, %v485
    %487 = vmatmul.bf16.gmra.mxu0 %v292
    %v488 = vpop.f32.mrf.mxu0
    %v489 = vadd.f32 %v312, %v488
    %v490 = vpop.f32.mrf.mxu0
    %v491 = vadd.f32 %v312, %v490
    %492 = vdwg.mxu0
    %v493 = vmax.f32 %v405, 0.0
    %v494 = vmax.f32 %v454, 0.0
    %v495 = vmax.f32 %v407, 0.0
    %v496 = vmax.f32 %v456, 0.0
    %v497 = vmax.f32 %v410, 0.0
    %v498 = vmax.f32 %v459, 0.0
    %v499 = vmax.f32 %v412, 0.0
    %v500 = vmax.f32 %v461, 0.0
    %v501 = vmax.f32 %v415, 0.0
    %v502 = vmax.f32 %v464, 0.0
    %v503 = vmax.f32 %v417, 0.0
    %v504 = vmax.f32 %v466, 0.0
    %v505 = vmax.f32 %v420, 0.0
    %v506 = vmax.f32 %v469, 0.0
    %v507 = vmax.f32 %v422, 0.0
    %v508 = vmax.f32 %v471, 0.0
    %v509 = vmax.f32 %v425, 0.0
    %v510 = vmax.f32 %v474, 0.0
    %v511 = vmax.f32 %v427, 0.0
    %v512 = vmax.f32 %v476, 0.0
    %v513 = vmax.f32 %v430, 0.0
    %v514 = vmax.f32 %v479, 0.0
    %v515 = vmax.f32 %v432, 0.0
    %v516 = vmax.f32 %v481, 0.0
    %v517 = vmax.f32 %v435, 0.0
    %v518 = vmax.f32 %v484, 0.0
    %v519 = vmax.f32 %v437, 0.0
    %v520 = vmax.f32 %v486, 0.0
    %v521 = vmax.f32 %v440, 0.0
    %v522 = vmax.f32 %v489, 0.0
    %v523 = vmax.f32 %v442, 0.0
    %v524 = vmax.f32 %v491, 0.0
    %v525 = vpack.c.bf16 %v495, %v493
    %v526 = vpack.c.bf16 %v496, %v494
    %v527 = vpack.c.bf16 %v499, %v497
    %v528 = vpack.c.bf16 %v500, %v498
    %v529 = vpack.c.bf16 %v503, %v501
    %v530 = vpack.c.bf16 %v504, %v502
    %v531 = vpack.c.bf16 %v507, %v505
    %v532 = vpack.c.bf16 %v508, %v506
    %v533 = vpack.c.bf16 %v511, %v509
    %v534 = vpack.c.bf16 %v512, %v510
    %v535 = vpack.c.bf16 %v515, %v513
    %v536 = vpack.c.bf16 %v516, %v514
    %v537 = vpack.c.bf16 %v519, %v517
    %v538 = vpack.c.bf16 %v520, %v518
    %v539 = vpack.c.bf16 %v523, %v521
    %v540 = vpack.c.bf16 %v524, %v522
    %v541 = vld [vmem:[#allocation8] sm:$0xf]
    %v542 = vld [vmem:[#allocation8 + $0x4] sm:$0xf]
    %v543 = vld [vmem:[#allocation8 + $0x8] sm:$0xf]
    %v544 = vld [vmem:[#allocation8 + $0xc] sm:$0xf]
    %v545 = vld [vmem:[#allocation8 + $0x10] sm:$0xf]
    %v546 = vld [vmem:[#allocation8 + $0x14] sm:$0xf]
    %v547 = vld [vmem:[#allocation8 + $0x18] sm:$0xf]
    %v548 = vld [vmem:[#allocation8 + $0x1c] sm:$0xf]
    %v549 = vld [vmem:[#allocation8 + $0x20] sm:$0xf]
    %v550 = vld [vmem:[#allocation8 + $0x24] sm:$0xf]
    %v551 = vld [vmem:[#allocation8 + $0x28] sm:$0xf]
    %v552 = vld [vmem:[#allocation8 + $0x2c] sm:$0xf]
    %v553 = vld [vmem:[#allocation8 + $0x30] sm:$0xf]
    %v554 = vld [vmem:[#allocation8 + $0x34] sm:$0xf]
    %v555 = vld [vmem:[#allocation8 + $0x38] sm:$0xf]
    %v556 = vld [vmem:[#allocation8 + $0x3c] sm:$0xf]
    %v557 = vld [vmem:[#allocation8 + $0x40] sm:$0xf]
    %v558 = vld [vmem:[#allocation8 + $0x44] sm:$0xf]
    %v559 = vld [vmem:[#allocation8 + $0x48] sm:$0xf]
    %v560 = vld [vmem:[#allocation8 + $0x4c] sm:$0xf]
    %v561 = vld [vmem:[#allocation8 + $0x50] sm:$0xf]
    %v562 = vld [vmem:[#allocation8 + $0x54] sm:$0xf]
    %v563 = vld [vmem:[#allocation8 + $0x58] sm:$0xf]
    %v564 = vld [vmem:[#allocation8 + $0x5c] sm:$0xf]
    %v565 = vld [vmem:[#allocation8 + $0x60] sm:$0xf]
    %v566 = vld [vmem:[#allocation8 + $0x64] sm:$0xf]
    %v567 = vld [vmem:[#allocation8 + $0x68] sm:$0xf]
    %v568 = vld [vmem:[#allocation8 + $0x6c] sm:$0xf]
    %v569 = vld [vmem:[#allocation8 + $0x70] sm:$0xf]
    %v570 = vld [vmem:[#allocation8 + $0x74] sm:$0xf]
    %v571 = vld [vmem:[#allocation8 + $0x78] sm:$0xf]
    %v572 = vld [vmem:[#allocation8 + $0x7c] sm:$0xf]
    %v605 = vunpack.c.l.b16 %v541
    %v606 = vunpack.c.l.b16 %v542
    %v607 = vunpack.c.l.b16 %v543
    %v608 = vunpack.c.l.b16 %v544
    %v609 = vunpack.c.l.b16 %v545
    %v610 = vunpack.c.l.b16 %v546
    %v611 = vunpack.c.l.b16 %v547
    %v612 = vunpack.c.l.b16 %v548
    %v613 = vunpack.c.l.b16 %v549
    %v614 = vunpack.c.l.b16 %v550
    %v615 = vunpack.c.l.b16 %v551
    %v616 = vunpack.c.l.b16 %v552
    %v617 = vunpack.c.l.b16 %v553
    %v618 = vunpack.c.l.b16 %v554
    %v619 = vunpack.c.l.b16 %v555
    %v620 = vunpack.c.l.b16 %v556
    %v621 = vunpack.c.l.b16 %v557
    %v622 = vunpack.c.l.b16 %v558
    %v623 = vunpack.c.l.b16 %v559
    %v624 = vunpack.c.l.b16 %v560
    %v625 = vunpack.c.l.b16 %v561
    %v626 = vunpack.c.l.b16 %v562
    %v627 = vunpack.c.l.b16 %v563
    %v628 = vunpack.c.l.b16 %v564
    %v629 = vunpack.c.l.b16 %v565
    %v630 = vunpack.c.l.b16 %v566
    %v631 = vunpack.c.l.b16 %v567
    %v632 = vunpack.c.l.b16 %v568
    %v633 = vunpack.c.l.b16 %v569
    %v634 = vunpack.c.l.b16 %v570
    %v635 = vunpack.c.l.b16 %v571
    %v636 = vunpack.c.l.b16 %v572
    %v637 = vpack.c.b16 %v606, %v605
    %v638 = vpack.c.b16 %v608, %v607
    %v639 = vpack.c.b16 %v610, %v609
    %v640 = vpack.c.b16 %v612, %v611
    %v641 = vpack.c.b16 %v614, %v613
    %v642 = vpack.c.b16 %v616, %v615
    %v643 = vpack.c.b16 %v618, %v617
    %v644 = vpack.c.b16 %v620, %v619
    %v645 = vpack.c.b16 %v622, %v621
    %v646 = vpack.c.b16 %v624, %v623
    %v647 = vpack.c.b16 %v626, %v625
    %v648 = vpack.c.b16 %v628, %v627
    %v649 = vpack.c.b16 %v630, %v629
    %v650 = vpack.c.b16 %v632, %v631
    %v651 = vpack.c.b16 %v634, %v633
    %v652 = vpack.c.b16 %v636, %v635
    %669 = vmatpush.bf16.msra.mxu0 %v644
    %670 = vmatpush.bf16.msra.mxu0 %v643
    %671 = vmatpush.bf16.msra.mxu0 %v642
    %672 = vmatpush.bf16.msra.mxu0 %v641
    %673 = vmatpush.bf16.msra.mxu0 %v640
    %674 = vmatpush.bf16.msra.mxu0 %v639
    %675 = vmatpush.bf16.msra.mxu0 %v638
    %676 = vmatpush.bf16.msra.mxu0 %v637
    %677 = vmatmul.bf16.gmra.mxu0 %v525
    %v678 = vpop.f32.mrf.mxu0
    %v679 = vadd.f32 0.0, %v678
    %v680 = vpop.f32.mrf.mxu0
    %v681 = vadd.f32 0.0, %v680
    %682 = vmatmul.bf16.gmra.mxu0 %v527
    %v683 = vpop.f32.mrf.mxu0
    %v684 = vadd.f32 0.0, %v683
    %v685 = vpop.f32.mrf.mxu0
    %v686 = vadd.f32 0.0, %v685
    %687 = vmatmul.bf16.gmra.mxu0 %v529
    %v688 = vpop.f32.mrf.mxu0
    %v689 = vadd.f32 0.0, %v688
    %v690 = vpop.f32.mrf.mxu0
    %v691 = vadd.f32 0.0, %v690
    %692 = vmatmul.bf16.gmra.mxu0 %v531
    %v693 = vpop.f32.mrf.mxu0
    %v694 = vadd.f32 0.0, %v693
    %v695 = vpop.f32.mrf.mxu0
    %v696 = vadd.f32 0.0, %v695
    %697 = vmatmul.bf16.gmra.mxu0 %v533
    %v698 = vpop.f32.mrf.mxu0
    %v699 = vadd.f32 0.0, %v698
    %v700 = vpop.f32.mrf.mxu0
    %v701 = vadd.f32 0.0, %v700
    %702 = vmatmul.bf16.gmra.mxu0 %v535
    %v703 = vpop.f32.mrf.mxu0
    %v704 = vadd.f32 0.0, %v703
    %v705 = vpop.f32.mrf.mxu0
    %v706 = vadd.f32 0.0, %v705
    %707 = vmatmul.bf16.gmra.mxu0 %v537
    %v708 = vpop.f32.mrf.mxu0
    %v709 = vadd.f32 0.0, %v708
    %v710 = vpop.f32.mrf.mxu0
    %v711 = vadd.f32 0.0, %v710
    %712 = vmatmul.bf16.gmra.mxu0 %v539
    %v713 = vpop.f32.mrf.mxu0
    %v714 = vadd.f32 0.0, %v713
    %v715 = vpop.f32.mrf.mxu0
    %v716 = vadd.f32 0.0, %v715
    %717 = vdwg.mxu0
    %718 = vmatpush.bf16.msra.mxu0 %v652
    %719 = vmatpush.bf16.msra.mxu0 %v651
    %720 = vmatpush.bf16.msra.mxu0 %v650
    %721 = vmatpush.bf16.msra.mxu0 %v649
    %722 = vmatpush.bf16.msra.mxu0 %v648
    %723 = vmatpush.bf16.msra.mxu0 %v647
    %724 = vmatpush.bf16.msra.mxu0 %v646
    %725 = vmatpush.bf16.msra.mxu0 %v645
    %726 = vmatmul.bf16.gmra.mxu0 %v526
    %v727 = vpop.f32.mrf.mxu0
    %v728 = vadd.f32 %v679, %v727
    %v729 = vpop.f32.mrf.mxu0
    %v730 = vadd.f32 %v681, %v729
    %731 = vmatmul.bf16.gmra.mxu0 %v528
    %v732 = vpop.f32.mrf.mxu0
    %v733 = vadd.f32 %v684, %v732
    %v734 = vpop.f32.mrf.mxu0
    %v735 = vadd.f32 %v686, %v734
    %736 = vmatmul.bf16.gmra.mxu0 %v530
    %v737 = vpop.f32.mrf.mxu0
    %v738 = vadd.f32 %v689, %v737
    %v739 = vpop.f32.mrf.mxu0
    %v740 = vadd.f32 %v691, %v739
    %741 = vmatmul.bf16.gmra.mxu0 %v532
    %v742 = vpop.f32.mrf.mxu0
    %v743 = vadd.f32 %v694, %v742
    %v744 = vpop.f32.mrf.mxu0
    %v745 = vadd.f32 %v696, %v744
    %746 = vmatmul.bf16.gmra.mxu0 %v534
    %v747 = vpop.f32.mrf.mxu0
    %v748 = vadd.f32 %v699, %v747
    %v749 = vpop.f32.mrf.mxu0
    %v750 = vadd.f32 %v701, %v749
    %751 = vmatmul.bf16.gmra.mxu0 %v536
    %v752 = vpop.f32.mrf.mxu0
    %v753 = vadd.f32 %v704, %v752
    %v754 = vpop.f32.mrf.mxu0
    %v755 = vadd.f32 %v706, %v754
    %756 = vmatmul.bf16.gmra.mxu0 %v538
    %v757 = vpop.f32.mrf.mxu0
    %v758 = vadd.f32 %v709, %v757
    %v759 = vpop.f32.mrf.mxu0
    %v760 = vadd.f32 %v711, %v759
    %761 = vmatmul.bf16.gmra.mxu0 %v540
    %v762 = vpop.f32.mrf.mxu0
    %v763 = vadd.f32 %v714, %v762
    %v764 = vpop.f32.mrf.mxu0
    %v765 = vadd.f32 %v716, %v764
    %766 = vdwg.mxu0
    %v767 = vpack.c.bf16 %v730, %v728
    %v768 = vpack.c.bf16 %v735, %v733
    %v769 = vpack.c.bf16 %v740, %v738
    %v770 = vpack.c.bf16 %v745, %v743
    %v771 = vpack.c.bf16 %v750, %v748
    %v772 = vpack.c.bf16 %v755, %v753
    %v773 = vpack.c.bf16 %v760, %v758
    %v774 = vpack.c.bf16 %v765, %v763
    %v775 = vld [vmem:[%s5] sm:$0x1]
    %v777 = vperm.slane %v775, 0
    %779 = vmatpush.bf16.msra.mxu0 %v774
    %780 = vmatpush.bf16.msra.mxu0 %v773
    %781 = vmatpush.bf16.msra.mxu0 %v772
    %782 = vmatpush.bf16.msra.mxu0 %v771
    %783 = vmatpush.bf16.msra.mxu0 %v770
    %784 = vmatpush.bf16.msra.mxu0 %v769
    %785 = vmatpush.bf16.msra.mxu0 %v768
    %786 = vmatpush.bf16.msra.mxu0 %v767
    %787 = vmatmul.bf16.gmra.mxu0 %v172
    %v788 = vpop.f32.mrf.mxu0
    %v789 = vadd.f32 %v777, %v788
    %v790 = vpop.f32.mrf.mxu0
    %v791 = vadd.f32 %v777, %v790
    %792 = vmatmul.bf16.gmra.mxu0 %v173
    %v793 = vpop.f32.mrf.mxu0
    %v794 = vadd.f32 %v777, %v793
    %v795 = vpop.f32.mrf.mxu0
    %v796 = vadd.f32 %v777, %v795
    %797 = vmatmul.bf16.gmra.mxu0 %v174
    %v798 = vpop.f32.mrf.mxu0
    %v799 = vadd.f32 %v777, %v798
    %v800 = vpop.f32.mrf.mxu0
    %v801 = vadd.f32 %v777, %v800
    %802 = vmatmul.bf16.gmra.mxu0 %v175
    %v803 = vpop.f32.mrf.mxu0
    %v804 = vadd.f32 %v777, %v803
    %v805 = vpop.f32.mrf.mxu0
    %v806 = vadd.f32 %v777, %v805
    %807 = vmatmul.bf16.gmra.mxu0 %v176
    %v808 = vpop.f32.mrf.mxu0
    %v809 = vadd.f32 %v777, %v808
    %v810 = vpop.f32.mrf.mxu0
    %v811 = vadd.f32 %v777, %v810
    %812 = vmatmul.bf16.gmra.mxu0 %v177
    %v813 = vpop.f32.mrf.mxu0
    %v814 = vadd.f32 %v777, %v813
    %v815 = vpop.f32.mrf.mxu0
    %v816 = vadd.f32 %v777, %v815
    %817 = vmatmul.bf16.gmra.mxu0 %v178
    %v818 = vpop.f32.mrf.mxu0
    %v819 = vadd.f32 %v777, %v818
    %v820 = vpop.f32.mrf.mxu0
    %v821 = vadd.f32 %v777, %v820
    %822 = vmatmul.bf16.gmra.mxu0 %v179
    %v823 = vpop.f32.mrf.mxu0
    %v824 = vadd.f32 %v777, %v823
    %v825 = vpop.f32.mrf.mxu0
    %v826 = vadd.f32 %v777, %v825
    %827 = vdwg.mxu0
    %v828 = vmax.f32 %v789, 0.0
    %v829 = vmax.f32 %v791, 0.0
    %v830 = vmax.f32 %v794, 0.0
    %v831 = vmax.f32 %v796, 0.0
    %v832 = vmax.f32 %v799, 0.0
    %v833 = vmax.f32 %v801, 0.0
    %v834 = vmax.f32 %v804, 0.0
    %v835 = vmax.f32 %v806, 0.0
    %v836 = vmax.f32 %v809, 0.0
    %v837 = vmax.f32 %v811, 0.0
    %v838 = vmax.f32 %v814, 0.0
    %v839 = vmax.f32 %v816, 0.0
    %v840 = vmax.f32 %v819, 0.0
    %v841 = vmax.f32 %v821, 0.0
    %v842 = vmax.f32 %v824, 0.0
    %v843 = vmax.f32 %v826, 0.0
    %v844 = vpack.c.bf16 %v829, %v828
    %v845 = vpack.c.bf16 %v831, %v830
    %v846 = vpack.c.bf16 %v833, %v832
    %v847 = vpack.c.bf16 %v835, %v834
    %v848 = vpack.c.bf16 %v837, %v836
    %v849 = vpack.c.bf16 %v839, %v838
    %v850 = vpack.c.bf16 %v841, %v840
    %v851 = vpack.c.bf16 %v843, %v842
    %v852 = vld [vmem:[#allocation10] sm:$0xf]
    %v853 = vld [vmem:[#allocation10 + $0x4] sm:$0xf]
    %v854 = vld [vmem:[#allocation10 + $0x8] sm:$0xf]
    %v855 = vld [vmem:[#allocation10 + $0xc] sm:$0xf]
    %v856 = vld [vmem:[#allocation10 + $0x10] sm:$0xf]
    %v857 = vld [vmem:[#allocation10 + $0x14] sm:$0xf]
    %v858 = vld [vmem:[#allocation10 + $0x18] sm:$0xf]
    %v859 = vld [vmem:[#allocation10 + $0x1c] sm:$0xf]
    %v860 = vld [vmem:[#allocation10 + $0x20] sm:$0xf]
    %v861 = vld [vmem:[#allocation10 + $0x24] sm:$0xf]
    %v862 = vld [vmem:[#allocation10 + $0x28] sm:$0xf]
    %v863 = vld [vmem:[#allocation10 + $0x2c] sm:$0xf]
    %v864 = vld [vmem:[#allocation10 + $0x30] sm:$0xf]
    %v865 = vld [vmem:[#allocation10 + $0x34] sm:$0xf]
    %v866 = vld [vmem:[#allocation10 + $0x38] sm:$0xf]
    %v867 = vld [vmem:[#allocation10 + $0x3c] sm:$0xf]
    %v884 = vunpack.c.l.b16 %v852
    %v885 = vunpack.c.l.b16 %v853
    %v886 = vunpack.c.l.b16 %v854
    %v887 = vunpack.c.l.b16 %v855
    %v888 = vunpack.c.l.b16 %v856
    %v889 = vunpack.c.l.b16 %v857
    %v890 = vunpack.c.l.b16 %v858
    %v891 = vunpack.c.l.b16 %v859
    %v892 = vunpack.c.l.b16 %v860
    %v893 = vunpack.c.l.b16 %v861
    %v894 = vunpack.c.l.b16 %v862
    %v895 = vunpack.c.l.b16 %v863
    %v896 = vunpack.c.l.b16 %v864
    %v897 = vunpack.c.l.b16 %v865
    %v898 = vunpack.c.l.b16 %v866
    %v899 = vunpack.c.l.b16 %v867
    %v900 = vpack.c.b16 %v885, %v884
    %v901 = vpack.c.b16 %v887, %v886
    %v902 = vpack.c.b16 %v889, %v888
    %v903 = vpack.c.b16 %v891, %v890
    %v904 = vpack.c.b16 %v893, %v892
    %v905 = vpack.c.b16 %v895, %v894
    %v906 = vpack.c.b16 %v897, %v896
    %v907 = vpack.c.b16 %v899, %v898
    %916 = vmatpush.bf16.msra.mxu0 %v907
    %917 = vmatpush.bf16.msra.mxu0 %v906
    %918 = vmatpush.bf16.msra.mxu0 %v905
    %919 = vmatpush.bf16.msra.mxu0 %v904
    %920 = vmatpush.bf16.msra.mxu0 %v903
    %921 = vmatpush.bf16.msra.mxu0 %v902
    %922 = vmatpush.bf16.msra.mxu0 %v901
    %923 = vmatpush.bf16.msra.mxu0 %v900
    %924 = vmatmul.bf16.gmra.mxu0 %v844
    %v925 = vpop.f32.mrf.mxu0
    %v926 = vadd.f32 0.0, %v925
    %v927 = vpop.f32.mrf.mxu0
    %v928 = vadd.f32 0.0, %v927
    %929 = vmatmul.bf16.gmra.mxu0 %v845
    %v930 = vpop.f32.mrf.mxu0
    %v931 = vadd.f32 0.0, %v930
    %v932 = vpop.f32.mrf.mxu0
    %v933 = vadd.f32 0.0, %v932
    %934 = vmatmul.bf16.gmra.mxu0 %v846
    %v935 = vpop.f32.mrf.mxu0
    %v936 = vadd.f32 0.0, %v935
    %v937 = vpop.f32.mrf.mxu0
    %v938 = vadd.f32 0.0, %v937
    %939 = vmatmul.bf16.gmra.mxu0 %v847
    %v940 = vpop.f32.mrf.mxu0
    %v941 = vadd.f32 0.0, %v940
    %v942 = vpop.f32.mrf.mxu0
    %v943 = vadd.f32 0.0, %v942
    %944 = vmatmul.bf16.gmra.mxu0 %v848
    %v945 = vpop.f32.mrf.mxu0
    %v946 = vadd.f32 0.0, %v945
    %v947 = vpop.f32.mrf.mxu0
    %v948 = vadd.f32 0.0, %v947
    %949 = vmatmul.bf16.gmra.mxu0 %v849
    %v950 = vpop.f32.mrf.mxu0
    %v951 = vadd.f32 0.0, %v950
    %v952 = vpop.f32.mrf.mxu0
    %v953 = vadd.f32 0.0, %v952
    %954 = vmatmul.bf16.gmra.mxu0 %v850
    %v955 = vpop.f32.mrf.mxu0
    %v956 = vadd.f32 0.0, %v955
    %v957 = vpop.f32.mrf.mxu0
    %v958 = vadd.f32 0.0, %v957
    %959 = vmatmul.bf16.gmra.mxu0 %v851
    %v960 = vpop.f32.mrf.mxu0
    %v961 = vadd.f32 0.0, %v960
    %v962 = vpop.f32.mrf.mxu0
    %v963 = vadd.f32 0.0, %v962
    %964 = vdwg.mxu0
    %v965 = vpack.c.bf16 %v928, %v926
    %v966 = vpack.c.bf16 %v933, %v931
    %v967 = vpack.c.bf16 %v938, %v936
    %v968 = vpack.c.bf16 %v943, %v941
    %v969 = vpack.c.bf16 %v948, %v946
    %v970 = vpack.c.bf16 %v953, %v951
    %v971 = vpack.c.bf16 %v958, %v956
    %v972 = vpack.c.bf16 %v963, %v961
    %v973 = vld [vmem:[%s7] sm:$0x1]
    %v975 = vperm.slane %v973, 0
    %977 = vmatpush.bf16.msra.mxu0 %v972
    %978 = vmatpush.bf16.msra.mxu0 %v971
    %979 = vmatpush.bf16.msra.mxu0 %v970
    %980 = vmatpush.bf16.msra.mxu0 %v969
    %981 = vmatpush.bf16.msra.mxu0 %v968
    %982 = vmatpush.bf16.msra.mxu0 %v967
    %983 = vmatpush.bf16.msra.mxu0 %v966
    %984 = vmatpush.bf16.msra.mxu0 %v965
    %985 = vmatmul.bf16.gmra.mxu0 %v172
    %v986 = vpop.f32.mrf.mxu0
    %v987 = vadd.f32 %v975, %v986
    %v988 = vpop.f32.mrf.mxu0
    %v989 = vadd.f32 %v975, %v988
    %990 = vmatmul.bf16.gmra.mxu0 %v173
    %v991 = vpop.f32.mrf.mxu0
    %v992 = vadd.f32 %v975, %v991
    %v993 = vpop.f32.mrf.mxu0
    %v994 = vadd.f32 %v975, %v993
    %995 = vmatmul.bf16.gmra.mxu0 %v174
    %v996 = vpop.f32.mrf.mxu0
    %v997 = vadd.f32 %v975, %v996
    %v998 = vpop.f32.mrf.mxu0
    %v999 = vadd.f32 %v975, %v998
    %1000 = vmatmul.bf16.gmra.mxu0 %v175
    %v1001 = vpop.f32.mrf.mxu0
    %v1002 = vadd.f32 %v975, %v1001
    %v1003 = vpop.f32.mrf.mxu0
    %v1004 = vadd.f32 %v975, %v1003
    %1005 = vmatmul.bf16.gmra.mxu0 %v176
    %v1006 = vpop.f32.mrf.mxu0
    %v1007 = vadd.f32 %v975, %v1006
    %v1008 = vpop.f32.mrf.mxu0
    %v1009 = vadd.f32 %v975, %v1008
    %1010 = vmatmul.bf16.gmra.mxu0 %v177
    %v1011 = vpop.f32.mrf.mxu0
    %v1012 = vadd.f32 %v975, %v1011
    %v1013 = vpop.f32.mrf.mxu0
    %v1014 = vadd.f32 %v975, %v1013
    %1015 = vmatmul.bf16.gmra.mxu0 %v178
    %v1016 = vpop.f32.mrf.mxu0
    %v1017 = vadd.f32 %v975, %v1016
    %v1018 = vpop.f32.mrf.mxu0
    %v1019 = vadd.f32 %v975, %v1018
    %1020 = vmatmul.bf16.gmra.mxu0 %v179
    %v1021 = vpop.f32.mrf.mxu0
    %v1022 = vadd.f32 %v975, %v1021
    %v1023 = vpop.f32.mrf.mxu0
    %v1024 = vadd.f32 %v975, %v1023
    %1025 = vdwg.mxu0
    %1026 = vst [vmem:[#allocation11] sm:$0xff] %v987
    %1027 = vst [vmem:[#allocation11 + $0x8] sm:$0xff] %v989
    %1028 = vst [vmem:[#allocation11 + $0x10] sm:$0xff] %v992
    %1029 = vst [vmem:[#allocation11 + $0x18] sm:$0xff] %v994
    %1030 = vst [vmem:[#allocation11 + $0x20] sm:$0xff] %v997
    %1031 = vst [vmem:[#allocation11 + $0x28] sm:$0xff] %v999
    %1032 = vst [vmem:[#allocation11 + $0x30] sm:$0xff] %v1002
    %1033 = vst [vmem:[#allocation11 + $0x38] sm:$0xff] %v1004
    %1034 = vst [vmem:[#allocation11 + $0x40] sm:$0xff] %v1007
    %1035 = vst [vmem:[#allocation11 + $0x48] sm:$0xff] %v1009
    %1036 = vst [vmem:[#allocation11 + $0x50] sm:$0xff] %v1012
    %1037 = vst [vmem:[#allocation11 + $0x58] sm:$0xff] %v1014
    %1038 = vst [vmem:[#allocation11 + $0x60] sm:$0xff] %v1017
    %1039 = vst [vmem:[#allocation11 + $0x68] sm:$0xff] %v1019
    %1040 = vst [vmem:[#allocation11 + $0x70] sm:$0xff] %v1022
    %1041 = vst [vmem:[#allocation11 + $0x78] sm:$0xff] %v1024
    // Predicated region
    $region54: #{tpu_custom_call.1} parent=1 // pred_check
      _
    $region55: #{tpu_custom_call.1} parent=1 // pred_check_branch
      %1043 = sbr.rel (0) target = $region57
    $region56: #{tpu_custom_call.1} parent=1 // pred_region
      %1045 = vsyncadd [#allocation4], 0
      %s1046 = sshll.u32 [#allocation11], 4
      %s1047 = int_to_ptr.vmem [resolvable:$true] %s1046
      %s1048 = sshll.u32 %s8, 4
      %s1049 = int_to_ptr.hbm [resolvable:$true] %s1048
      %1054 = dma.vmem_to_hbm [thread:$0]  %s1047, 2048, %s1049, [#allocation4], 128, 128, 8
    $region57: #{tpu_custom_call.1} parent=1 // pred_fallthru
      _
    // Predicated region
    $region58: #{tpu_custom_call.1} parent=1 // pred_check
      _
    $region59: #{tpu_custom_call.1} parent=1 // pred_check_branch
      %1056 = sbr.rel (0) target = $region61
    $region60: #{tpu_custom_call.1} parent=1 // pred_region
      %1058 = dma.done [#allocation4], 2048
    $region61: #{tpu_custom_call.1} parent=1 // pred_fallthru
      _
    %1059 = vsyncpa [#allocation3], 1
    %1060 = vsyncpa [#allocation6], 1
    %1061 = vsyncpa [#allocation9], 1
    %1062 = vsyncpa [#allocation4], 1

</llo_original>
